<compile_context>
chip_gen: v7x
topology: tpu7x:2x2x1
jax: 0.10.0
libtpu: 0.0.40
codegen_flags: <defaults>
</compile_context>

<pallas_src>
from typing import NamedTuple

import jax
import jax.numpy as jnp
from jax import lax
from jax.experimental import pallas as pl
from jax.experimental.pallas import tpu as pltpu


class BernoulliDistribution(NamedTuple):
    logits: jax.Array
    probs: jax.Array


def _round_up(v: int, m: int) -> int:
    return (v + m - 1) // m * m


def _choose_tile(dim: int, align: int, max_tile: int):
    """Return (tile, padded_dim) for one problem dimension.

    * dim <= max_tile: single full-extent block, zero padding (valid per the
      (8,128) rule because the block equals the full array dim).
    * otherwise: largest `align`-aligned divisor of round_up(dim, align) that
      is <= max_tile (zero padding beyond alignment).  Falls back to max_tile
      with round-up padding only if that divisor is pathologically small.
    """
    if dim <= max_tile:
        return dim, dim
    dim_a = _round_up(dim, align)
    cap = (max_tile // align) * align
    best = None
    t = cap
    while t >= align:
        if dim_a % t == 0:
            best = t
            break
        t -= align
    if best is not None and best * 2 >= cap:
        return best, dim_a
    return cap, _round_up(dim_a, cap)


# ---------------------------------------------------------------------------
# Kernels
# ---------------------------------------------------------------------------

def _kernel_single_k(x_ref, w_ref, b_ref, logits_ref, probs_ref):
    # Whole contraction dim fits one block: no accumulator scratch needed.
    acc = lax.dot_general(
        x_ref[...], w_ref[...],
        dimension_numbers=(((1,), (1,)), ((), ())),   # x.K contracted with W.K
        preferred_element_type=jnp.float32,
    )
    logits = acc + b_ref[...]
    logits_ref[...] = logits.astype(logits_ref.dtype)
    probs_ref[...] = jax.nn.sigmoid(logits).astype(probs_ref.dtype)


def _kernel_multi_k(x_ref, w_ref, b_ref, logits_ref, probs_ref, acc_ref):
    k = pl.program_id(2)
    partial = lax.dot_general(
        x_ref[...], w_ref[...],
        dimension_numbers=(((1,), (1,)), ((), ())),
        preferred_element_type=jnp.float32,
    )

    @pl.when(k == 0)
    def _():                       # first K block: assign (no zero-init pass)
        acc_ref[...] = partial

    @pl.when(k != 0)
    def _():
        acc_ref[...] += partial

    @pl.when(k == pl.num_programs(2) - 1)
    def _():
        logits = acc_ref[...] + b_ref[...]          # f32 epilogue
        logits_ref[...] = logits.astype(logits_ref.dtype)
        probs_ref[...] = jax.nn.sigmoid(logits).astype(probs_ref.dtype)


# ---------------------------------------------------------------------------
# Wrapper
# ---------------------------------------------------------------------------

def bernoulli_distribution_layer(x, weight, bias, *, tm=512, tn=512, tk=1024):
    """Forward of BernoulliDistributionLayer with a Linear transform.

    x:      (B, Din)    float32
    weight: (Dout, Din) float32  (nn.Linear layout)
    bias:   (Dout,)     float32
    Returns BernoulliDistribution(logits=(B, Dout), probs=(B, Dout)).
    """
    B, Din = x.shape
    Dout, Din_w = weight.shape
    assert Din == Din_w, (Din, Din_w)

    tm, Mp = _choose_tile(B, 8, tm)       # M blocks: sublane (8) alignment
    tn, Np = _choose_tile(Dout, 128, tn)  # N blocks: lane (128) alignment
    tk, Kp = _choose_tile(Din, 128, tk)   # K blocks: lane (128) alignment

    m_blocks, n_blocks, k_blocks = Mp // tm, Np // tn, Kp // tk

    # v7x megacore: if everything collapsed to one (i, j) block but the batch
    # is large, split M in two so the parallel grid axes can shard over 2 TCs.
    if m_blocks == 1 and n_blocks == 1 and B >= 256 and Mp % 16 == 0:
        tm = Mp // 2
        m_blocks = 2

    # Pad only when genuinely required (multi-block axis w/ non-aligned dim).
    x_p = x if (Mp == B and Kp == Din) else jnp.pad(
        x, ((0, Mp - B), (0, Kp - Din)))
    w_p = weight if (Np == Dout and Kp == Din) else jnp.pad(
        weight, ((0, Np - Dout), (0, Kp - Din)))
    b_p = (bias if Np == Dout else jnp.pad(bias, (0, Np - Dout))).reshape(1, Np)

    out_shapes = (
        jax.ShapeDtypeStruct((Mp, Np), jnp.float32),  # logits
        jax.ShapeDtypeStruct((Mp, Np), jnp.float32),  # probs
    )

    # Explicit VMEM budget: double-buffered inputs + 2 double-buffered outputs
    # (+ accumulator when K is tiled), with headroom.  Safe on v5e/v6e/v7x.
    itemsize = 4
    needed = (2 * (tm * tk + tn * tk + tn) + 4 * tm * tn) * itemsize
    if k_blocks > 1:
        needed += tm * tn * itemsize
    vmem_limit = int(min(max(needed + (8 << 20), 32 << 20), 48 << 20))

    cost = pl.CostEstimate(
        flops=2 * Mp * Np * Kp,
        transcendentals=Mp * Np,
        bytes_accessed=itemsize * (Mp * Kp * n_blocks + Np * Kp * m_blocks
                                   + 2 * Mp * Np),
    )

    if k_blocks == 1:
        kernel = _kernel_single_k
        grid_spec = pltpu.PrefetchScalarGridSpec(
            num_scalar_prefetch=0,
            grid=(m_blocks, n_blocks),
            in_specs=[
                pl.BlockSpec((tm, tk), lambda i, j: (i, 0)),   # x
                pl.BlockSpec((tn, tk), lambda i, j: (j, 0)),   # W (Linear layout)
                pl.BlockSpec((1, tn), lambda i, j: (0, j)),    # bias
            ],
            out_specs=(
                pl.BlockSpec((tm, tn), lambda i, j: (i, j)),   # logits
                pl.BlockSpec((tm, tn), lambda i, j: (i, j)),   # probs
            ),
        )
        semantics = ("parallel", "parallel")
    else:
        kernel = _kernel_multi_k
        grid_spec = pltpu.PrefetchScalarGridSpec(
            num_scalar_prefetch=0,
            grid=(m_blocks, n_blocks, k_blocks),
            in_specs=[
                pl.BlockSpec((tm, tk), lambda i, j, k: (i, k)),   # x
                pl.BlockSpec((tn, tk), lambda i, j, k: (j, k)),   # W
                pl.BlockSpec((1, tn), lambda i, j, k: (0, j)),    # bias
            ],
            out_specs=(
                pl.BlockSpec((tm, tn), lambda i, j, k: (i, j)),   # logits
                pl.BlockSpec((tm, tn), lambda i, j, k: (i, j)),   # probs
            ),
            scratch_shapes=[pltpu.VMEM((tm, tn), jnp.float32)],
        )
        semantics = ("parallel", "parallel", "arbitrary")

    logits_p, probs_p = pl.pallas_call(
        kernel,
        out_shape=out_shapes,
        grid_spec=grid_spec,
        compiler_params=pltpu.CompilerParams(
            dimension_semantics=semantics,
            vmem_limit_bytes=vmem_limit,
        ),
        cost_estimate=cost,
    )(x_p, w_p, b_p)

    if Mp != B or Np != Dout:
        logits_p = logits_p[:B, :Dout]
        probs_p = probs_p[:B, :Dout]
    return BernoulliDistribution(logits=logits_p, probs=probs_p)


# ---------------------------------------------------------------------------
# Reference + test
# ---------------------------------------------------------------------------

def _reference(x, weight, bias):
    logits = x @ weight.T + bias
    return logits, jax.nn.sigmoid(logits)


def _run_case(key, B, Din, Dout):
    kx, kw, kb = jax.random.split(key, 3)
    x = jax.random.normal(kx, (B, Din), dtype=jnp.float32)
    bound = 1.0 / jnp.sqrt(jnp.float32(Din))
    weight = jax.random.uniform(kw, (Dout, Din), minval=-bound, maxval=bound,
                                dtype=jnp.float32)
    bias = jax.random.uniform(kb, (Dout,), minval=-bound, maxval=bound,
                              dtype=jnp.float32)

    dist = bernoulli_distribution_layer(x, weight, bias)
    jax.block_until_ready(dist.logits)
    jax.block_until_ready(dist.probs)

    ref_logits, ref_probs = _reference(x, weight, bias)
    assert dist.logits.shape == (B, Dout) and dist.probs.shape == (B, Dout)
    assert jnp.allclose(dist.logits, ref_logits, atol=2e-4, rtol=2e-4)
    assert jnp.allclose(dist.probs, ref_probs, atol=5e-5, rtol=1e-5)


if __name__ == "__main__":
    key = jax.random.PRNGKey(0)
    k1, k2 = jax.random.split(key)

    # Small shape consistent with the module's typical use (single block,
    # zero padding, single-K kernel path).
    _run_case(k1, B=8, Din=32, Dout=16)
    # Larger shape: exercises the divisor-based tiling + megacore M split
    # (grid (2,1), still zero padding for 320x640x384).
    _run_case(k2, B=320, Din=640, Dout=384)

    # TODO(synk): torch.distributions.Bernoulli also exposes sample()/log_prob()
    # and computes probs lazily; only the deterministic forward tensors
    # (logits, probs) are produced here.
    print("KERNEL_OK")
</pallas_src>

<mosaic_0001>
module attributes {stable_mosaic.version = 11 : i64} {
  func.func @_kernel_single_k(%arg0: i32, %arg1: i32, %arg2: memref<8x32xf32, #tpu.memory_space<vmem>>, %arg3: memref<16x32xf32, #tpu.memory_space<vmem>>, %arg4: memref<1x16xf32, #tpu.memory_space<vmem>>, %arg5: memref<8x16xf32, #tpu.memory_space<vmem>>, %arg6: memref<8x16xf32, #tpu.memory_space<vmem>>) attributes {dimension_semantics = [#tpu.dimension_semantics<parallel>, #tpu.dimension_semantics<parallel>], iteration_bounds = array<i64: 1, 1>, scalar_prefetch = 0 : i64, scratch_operands = 0 : i64, tpu.core_type = #tpu.core_type<tc>, window_params = [{transform_indices = @transform_0, window_bounds = array<i64: 8, 32>}, {transform_indices = @transform_1, window_bounds = array<i64: 16, 32>}, {transform_indices = @transform_2, window_bounds = array<i64: 1, 16>}, {transform_indices = @transform_3, window_bounds = array<i64: 8, 16>}, {transform_indices = @transform_4, window_bounds = array<i64: 8, 16>}]} {
    %c0 = arith.constant 0 : index
    %c0_0 = arith.constant 0 : index
    %0 = vector.load %arg2[%c0, %c0_0] : memref<8x32xf32, #tpu.memory_space<vmem>>, vector<8x32xf32>
    %c0_1 = arith.constant 0 : index
    %c0_2 = arith.constant 0 : index
    %1 = vector.load %arg3[%c0_1, %c0_2] : memref<16x32xf32, #tpu.memory_space<vmem>>, vector<16x32xf32>
    %cst = arith.constant dense<0.000000e+00> : vector<8x16xf32>
    %2 = tpu.matmul %0, %1, %cst {dimension_numbers = #tpu.dot_dimension_numbers<[1], [1], [0], [0], [0, 0, 1, 0], [], []>} : vector<8x32xf32>, vector<16x32xf32>, vector<8x16xf32> -> vector<8x16xf32>
    %c0_3 = arith.constant 0 : index
    %c0_4 = arith.constant 0 : index
    %3 = vector.load %arg4[%c0_3, %c0_4] : memref<1x16xf32, #tpu.memory_space<vmem>>, vector<1x16xf32>
    %4 = vector.broadcast %3 : vector<1x16xf32> to vector<8x16xf32>
    %5 = arith.addf %2, %4 : vector<8x16xf32>
    %c0_5 = arith.constant 0 : index
    %c0_6 = arith.constant 0 : index
    %6 = vector.load %arg5[%c0_5, %c0_6] : memref<8x16xf32, #tpu.memory_space<vmem>>, vector<8x16xf32>
    tpu.vector_store %arg5[%c0_5, %c0_6], %5 {strides = array<i32>} : memref<8x16xf32, #tpu.memory_space<vmem>>, vector<8x16xf32>,
    %7 = arith.negf %5 : vector<8x16xf32>
    %8 = math.exp %7 : vector<8x16xf32>
    %cst_7 = arith.constant 1.000000e+00 : f32
    %9 = vector.broadcast %cst_7 : f32 to vector<8x16xf32>
    %10 = arith.addf %9, %8 : vector<8x16xf32>
    %11 = arith.divf %9, %10 : vector<8x16xf32>
    %c0_8 = arith.constant 0 : index
    %c0_9 = arith.constant 0 : index
    %12 = vector.load %arg6[%c0_8, %c0_9] : memref<8x16xf32, #tpu.memory_space<vmem>>, vector<8x16xf32>
    tpu.vector_store %arg6[%c0_8, %c0_9], %11 {strides = array<i32>} : memref<8x16xf32, #tpu.memory_space<vmem>>, vector<8x16xf32>,
    return
  }
  func.func @transform_0(%arg0: i32, %arg1: i32) -> (i32, i32) {
    %c0_i32 = arith.constant 0 : i32
    %c0_i32_0 = arith.constant 0 : i32
    return %arg0, %c0_i32 : i32, i32
  }
  func.func @transform_1(%arg0: i32, %arg1: i32) -> (i32, i32) {
    %c0_i32 = arith.constant 0 : i32
    %c0_i32_0 = arith.constant 0 : i32
    return %arg1, %c0_i32 : i32, i32
  }
  func.func @transform_2(%arg0: i32, %arg1: i32) -> (i32, i32) {
    %c0_i32 = arith.constant 0 : i32
    %c0_i32_0 = arith.constant 0 : i32
    return %c0_i32, %arg1 : i32, i32
  }
  func.func @transform_3(%arg0: i32, %arg1: i32) -> (i32, i32) {
    %c0_i32 = arith.constant 0 : i32
    return %arg0, %arg1 : i32, i32
  }
  func.func @transform_4(%arg0: i32, %arg1: i32) -> (i32, i32) {
    %c0_i32 = arith.constant 0 : i32
    return %arg0, %arg1 : i32, i32
  }
}

</mosaic_0001>

<llo_original>
// kernel: tpu_custom_call.1
$region0: #{tpu_custom_call.1}
  #allocation0 [shape = 'u32[]', space=smem, size = 0x4, offset = 0x4, fixed_abs, tag = 'smem constant byte address 0x4 - core index']
  #allocation1 [shape = 'u32[144,128]{1,0:T(1,128)}', space=vmem, size = 0x12000, scoped, tag = 'internal scratch']
  %s0 = inlined_call_operand.hbm [shape: f32[8,32], index: 0, kind: input, shape index: {}]
  %s1 = inlined_call_operand.hbm [shape: f32[16,32], index: 1, kind: input, shape index: {}]
  %s2 = inlined_call_operand.vmem [shape: f32[1,16], index: 2, kind: input, shape index: {}]
  %s3 = inlined_call_operand.hbm [shape: f32[8,16], index: 3, kind: output, shape index: {0}]
  %s4 = inlined_call_operand.hbm [shape: f32[8,16], index: 4, kind: output, shape index: {1}]
  %5 = xla_tuple %s3, %s4
  %s6 = sld [smem:[#allocation0]]
  $region38: #{tpu_custom_call.1} parent=0
    _
  %s8 = ssub.s32 1, %s6
  %s9 = scalar_select 0, %s8, %s6
  $region1: #{tpu_custom_call.1} parent=0
    #allocation2 [shape = 'u8[4096]{0}', space=vmem, size = 0x1000, scoped, tag = 'input window, operand 0, single buffered']
    #allocation3 [shape = 's32[1]{0}', space=sflag, size = 0x4, scoped, tag = 'scoped memory for tpu_custom_call.1']
    #allocation4 [shape = 's32[1]{0}', space=sflag, size = 0x4, scoped, tag = 'scoped memory for tpu_custom_call.1']
    #allocation5 [shape = 'u8[8192]{0}', space=vmem, size = 0x2000, scoped, tag = 'input window, operand 1, single buffered']
    #allocation6 [shape = 's32[1]{0}', space=sflag, size = 0x4, scoped, tag = 'scoped memory for tpu_custom_call.1']
    #allocation7 [shape = 'u8[4096]{0}', space=vmem, size = 0x1000, scoped, tag = 'output window, operand 0, single buffered']
    #allocation8 [shape = 'u8[4096]{0}', space=vmem, size = 0x1000, scoped, tag = 'output window, operand 1, single buffered']
    #allocation9 [shape = 's32[1]{0}', space=sflag, size = 0x4, scoped, tag = 'scoped memory for tpu_custom_call.1']
    %10 = vsyncpa [#allocation3], 0
    %11 = vsyncpa [#allocation6], 0
    %12 = vsyncpa [#allocation4], 0
    %13 = vsyncpa [#allocation9], 0
    // Predicated region
    $region2: #{tpu_custom_call.1} parent=1 // pred_check
      _
    $region3: #{tpu_custom_call.1} parent=1 // pred_check_branch
      %15 = sbr.rel (0) target = $region5
    $region4: #{tpu_custom_call.1} parent=1 // pred_region
      %s17 = ssub.s32 128, 128
      %18 = vsyncadd [#allocation3], %s17
      %s20 = sshll.u32 [#allocation2], 4
      %s21 = int_to_ptr.vmem [resolvable:$true] %s20
      %23 = dma.hbm_to_vmem [thread:$0]  %s0, 128, %s21, [#allocation3]
    $region5: #{tpu_custom_call.1} parent=1 // pred_fallthru
      _
    // Predicated region
    $region6: #{tpu_custom_call.1} parent=1 // pred_check
      _
    $region7: #{tpu_custom_call.1} parent=1 // pred_check_branch
      %25 = sbr.rel (0) target = $region9
    $region8: #{tpu_custom_call.1} parent=1 // pred_region
      %s27 = ssub.s32 256, 256
      %28 = vsyncadd [#allocation6], %s27
      %s29 = sshll.u32 [#allocation5], 4
      %s30 = int_to_ptr.vmem [resolvable:$true] %s29
      %35 = dma.hbm_to_vmem [thread:$0]  %s1, 256, %s30, [#allocation6], 128, 128, 8
    $region9: #{tpu_custom_call.1} parent=1 // pred_fallthru
      _
    // Predicated region
    $region10: #{tpu_custom_call.1} parent=1 // pred_check
      _
    $region11: #{tpu_custom_call.1} parent=1 // pred_check_branch
      %37 = sbr.rel (0) target = $region13
    $region12: #{tpu_custom_call.1} parent=1 // pred_region
      _
    $region13: #{tpu_custom_call.1} parent=1 // pred_fallthru
      _
    // Predicated region
    $region14: #{tpu_custom_call.1} parent=1 // pred_check
      _
    $region15: #{tpu_custom_call.1} parent=1 // pred_check_branch
      %39 = sbr.rel (0) target = $region17
    $region16: #{tpu_custom_call.1} parent=1 // pred_region
      %40 = dma.done [#allocation3], 128
    $region17: #{tpu_custom_call.1} parent=1 // pred_fallthru
      _
    // Predicated region
    $region18: #{tpu_custom_call.1} parent=1 // pred_check
      _
    $region19: #{tpu_custom_call.1} parent=1 // pred_check_branch
      %42 = sbr.rel (0) target = $region21
    $region20: #{tpu_custom_call.1} parent=1 // pred_region
      %43 = dma.done [#allocation6], 256
    $region21: #{tpu_custom_call.1} parent=1 // pred_fallthru
      _
    %v44 = vld [vmem:[#allocation2] sm:$0xff]
    %v45 = vld [vmem:[#allocation5] sm:$0xff]
    %v46 = vld [vmem:[#allocation5 + $0x8] sm:$0xff]
    %v47 = vld [vmem:[%s2] sm:$0x1]
    %v49 = vlaneseq
    %v50 = vshrl.u32 %v49, 7
    %v51 = vsub.s32 0, %v50
    %v52 = vrot.slane %v47, %v51
    %vm54 = vcmask 261120
    %v56 = vsel %vm54, %v44, 0
    %v59 = vsel %vm54, %v45, 0
    %v62 = vsel %vm54, %v46, 0
    %64 = vmatprep.subr.mxu0 0.0
    %65 = vmatpush1.xpose.msra.mxu0 %v59
    %66 = vmatprep.subr.mxu0 0.0
    %67 = vmatpush1.xpose.msra.mxu0 %v62
    %68 = vmatprep.subr.mxu0 0.0
    %69 = vmatpush1.xpose.msra.mxu0 0.0
    %70 = vmatprep.subr.mxu0 0.0
    %71 = vmatpush1.xpose.msra.mxu0 0.0
    %72 = vmatprep.subr.mxu0 0.0
    %73 = vmatpush1.xpose.msra.mxu0 0.0
    %74 = vmatprep.subr.mxu0 0.0
    %75 = vmatpush1.xpose.msra.mxu0 0.0
    %76 = vmatprep.subr.mxu0 0.0
    %77 = vmatpush1.xpose.msra.mxu0 0.0
    %78 = vmatprep.subr.mxu0 0.0
    %79 = vmatpush1.xpose.msra.mxu0 0.0
    %80 = vmatprep.subr.mxu0 0.0
    %81 = vmatpush1.xpose.msra.mxu0 0.0
    %82 = vmatprep.subr.mxu0 0.0
    %83 = vmatpush1.xpose.msra.mxu0 0.0
    %84 = vmatprep.subr.mxu0 0.0
    %85 = vmatpush1.xpose.msra.mxu0 0.0
    %86 = vmatprep.subr.mxu0 0.0
    %87 = vmatpush1.xpose.msra.mxu0 0.0
    %88 = vmatprep.subr.mxu0 0.0
    %89 = vmatpush1.xpose.msra.mxu0 0.0
    %90 = vmatprep.subr.mxu0 0.0
    %91 = vmatpush1.xpose.msra.mxu0 0.0
    %92 = vmatprep.subr.mxu0 0.0
    %93 = vmatpush1.xpose.msra.mxu0 0.0
    %94 = vmatprep.subr.mxu0 0.0
    %95 = vmatpush1.xpose.msra.mxu0 0.0
    %96 = vmatprep.subr.mxu0 0.0
    %97 = vmatpush1.xpose.msra.mxu0 0.0
    %98 = vmatprep.subr.mxu0 0.0
    %99 = vmatpush1.xpose.msra.mxu0 0.0
    %100 = vmatprep.subr.mxu0 0.0
    %101 = vmatpush1.xpose.msra.mxu0 0.0
    %102 = vmatprep.subr.mxu0 0.0
    %103 = vmatpush1.xpose.msra.mxu0 0.0
    %104 = vmatprep.subr.mxu0 0.0
    %105 = vmatpush1.xpose.msra.mxu0 0.0
    %106 = vmatprep.subr.mxu0 0.0
    %107 = vmatpush1.xpose.msra.mxu0 0.0
    %108 = vmatprep.subr.mxu0 0.0
    %109 = vmatpush1.xpose.msra.mxu0 0.0
    %110 = vmatprep.subr.mxu0 0.0
    %111 = vmatpush1.xpose.msra.mxu0 0.0
    %112 = vmatprep.subr.mxu0 0.0
    %113 = vmatpush1.xpose.msra.mxu0 0.0
    %114 = vmatprep.subr.mxu0 0.0
    %115 = vmatpush1.xpose.msra.mxu0 0.0
    %116 = vmatprep.subr.mxu0 0.0
    %117 = vmatpush1.xpose.msra.mxu0 0.0
    %118 = vmatprep.subr.mxu0 0.0
    %119 = vmatpush1.xpose.msra.mxu0 0.0
    %120 = vmatprep.subr.mxu0 0.0
    %121 = vmatpush1.xpose.msra.mxu0 0.0
    %122 = vmatprep.subr.mxu0 0.0
    %123 = vmatpush1.xpose.msra.mxu0 0.0
    %124 = vmatprep.subr.mxu0 0.0
    %125 = vmatpush1.xpose.msra.mxu0 0.0
    %126 = vmatprep.subr.mxu0 0.0
    %127 = vmatpush1.xpose.msra.mxu0 0.0
    %128 = vmatprep.mubr.f32.mxu0 0.0
    %129 = vmatmul.mubr.f32.gmra.mrb[0].mxu0 %v56
    %v130 = vpop.f32.mrb[0].mxu0
    %v131 = vadd.f32 %v52, %v130
    %v132 = vpop.f32.mrb[0].mxu0
    %133 = vdwg.mxu0
    %vm134 = vcmask 130048
    %135 = vst.msk [vmem:[#allocation7] sm:$0xff] %vm134, %v131
    %v136 = vxor.u32 %v131, 2147483648
    %v137 = vmul.f32 %v136, 1.442695
    %v138 = vpow.pop %v137
    %v139 = vadd.f32 %v138, 1.0
    %v140 = vrcp.pop %v139
    %v141 = vmul.f32 1.0, %v140
    %142 = vst.msk [vmem:[#allocation8] sm:$0xff] %vm134, %v141
    // Predicated region
    $region22: #{tpu_custom_call.1} parent=1 // pred_check
      _
    $region23: #{tpu_custom_call.1} parent=1 // pred_check_branch
      %144 = sbr.rel (0) target = $region25
    $region24: #{tpu_custom_call.1} parent=1 // pred_region
      %s146 = ssub.s32 128, 128
      %147 = vsyncadd [#allocation4], %s146
      %s149 = sshll.u32 [#allocation7], 4
      %s150 = int_to_ptr.vmem [resolvable:$true] %s149
      %152 = dma.vmem_to_hbm [thread:$0]  %s150, 128, %s3, [#allocation4]
    $region25: #{tpu_custom_call.1} parent=1 // pred_fallthru
      _
    // Predicated region
    $region26: #{tpu_custom_call.1} parent=1 // pred_check
      _
    $region27: #{tpu_custom_call.1} parent=1 // pred_check_branch
      %154 = sbr.rel (0) target = $region29
    $region28: #{tpu_custom_call.1} parent=1 // pred_region
      %s156 = ssub.s32 128, 128
      %157 = vsyncadd [#allocation9], %s156
      %s159 = sshll.u32 [#allocation8], 4
      %s160 = int_to_ptr.vmem [resolvable:$true] %s159
      %162 = dma.vmem_to_hbm [thread:$0]  %s160, 128, %s4, [#allocation9]
    $region29: #{tpu_custom_call.1} parent=1 // pred_fallthru
      _
    // Predicated region
    $region30: #{tpu_custom_call.1} parent=1 // pred_check
      _
    $region31: #{tpu_custom_call.1} parent=1 // pred_check_branch
      %164 = sbr.rel (0) target = $region33
    $region32: #{tpu_custom_call.1} parent=1 // pred_region
      %165 = dma.done [#allocation4], 128
    $region33: #{tpu_custom_call.1} parent=1 // pred_fallthru
      _
    // Predicated region
    $region34: #{tpu_custom_call.1} parent=1 // pred_check
      _
    $region35: #{tpu_custom_call.1} parent=1 // pred_check_branch
      %167 = sbr.rel (0) target = $region37
    $region36: #{tpu_custom_call.1} parent=1 // pred_region
      %168 = dma.done [#allocation9], 128
    $region37: #{tpu_custom_call.1} parent=1 // pred_fallthru
      _
    %169 = vsyncpa [#allocation3], 1
    %170 = vsyncpa [#allocation6], 1
    %171 = vsyncpa [#allocation4], 1
    %172 = vsyncpa [#allocation9], 1

</llo_original>
